<compile_context>
chip_gen: v6e
topology: v6e:2x2x1
jax: 0.10.0
libtpu: 0.0.40
codegen_flags: <defaults>
</compile_context>

<pallas_src>
import numpy as np
import jax
import jax.numpy as jnp
from jax import lax
from jax.experimental import pallas as pl
from jax.experimental.pallas import tpu as pltpu

B = 8                       # batch
BM = 8                      # batch rows per grid step
NS = 5                      # number of conv series (x1..x5); series 6 is "base_feature"
CIN, KLEN = 2, 5            # Conv1d in-channels / kernel size (= stride = length)
COUT = 8                    # Conv1d out-channels
F_CONV = NS * COUT          # 40
F_BASE = CIN * KLEN         # 10
X_LANES = 6 * CIN * KLEN    # 60 = x.reshape(B, 60)
F_IN = 75                   # fc11.in_features
H1, H2 = 128, 64
SH = 0.9
LANES = 128

# stage-0 (per-branch) input lane layout, built in-kernel:
#   0..59    x.reshape(60)       (5 conv series + base feature, raw)
#   60..62   0
#   63       1.0                 (conv bias lane)
#   64..108  one-hot indicator lanes for the 5 onehot tables (+-1)
#   109      0
#   110..118 input[2] (9 lanes; cols 1..8 = x_mirr, col 0 hits a zero weight row)
#   119..127 input[3] (9 lanes; cols 2..8 = x_nomirr)
OH_REL = (0, 6, 18, 30, 35)        # per-table offsets inside lanes 64..108
L_OH = 64
L_BIAS = 63

# bf16 weight-slab row regions, (SLAB_ROWS, 128); all region starts 128-aligned
R_W0 = 0        # stage-0: conv block-diag + conv bias + onehot tables + passthrough eyes
R_W11 = 128     # fc11_w.T (75,128); row 127 = fc11_b (bias lane 127 trick)
R_W12 = 256     # fc12_w.T (128,64)
R_WOPEN = 384   # [flip(pi_open)|pi_open].T  (64,6)
R_BROWS = 512   # row 512 = fc12 bias, row 513 = pi_open(6-wide) bias
SLAB_ROWS = 528


# ---------------------------------------------------------------------------
# Pallas kernel: full forward for one batch tile, both mirror branches fused
# along sublanes (M = 2*BM = 16 rows).  4 MXU dots total, all K = 128, bf16.
# ---------------------------------------------------------------------------
def net_kernel(idx_ref, xa_ref, xb_ref, in2_ref, in3_ref, w_ref, out_ref, x0_ref):
    nb = out_ref.shape[0]                               # BM
    f32 = jnp.float32
    bf16 = jnp.bfloat16

    ids = idx_ref[...]                                  # (nb,5) int32
    in2 = in2_ref[...]                                  # (nb,9) f32
    in3 = in3_ref[...]                                  # (nb,9) f32

    # ---- one-hot indicator lanes for the 5 embedding tables (45 lanes) ----
    l45 = lax.broadcasted_iota(jnp.int32, (nb, 45), 1)
    oh_a = jnp.zeros((nb, 45), f32)
    for k in range(5):
        oh_a = oh_a + jnp.where(l45 == ids[:, k:k + 1] + OH_REL[k], 1.0, 0.0)
    # mirror branch negates the last onehot feature (onehot_04 output):
    # negate its indicator lane so the table matmul produces -onehot_04[idx].
    oh_b = oh_a - 2.0 * jnp.where(l45 == ids[:, 4:5] + OH_REL[4], 1.0, 0.0)

    # ---- assemble both branch rows of the stage-0 input (2*nb, 128) -------
    ones1 = jnp.ones((nb, 1), f32)
    z3 = jnp.zeros((nb, 3), f32)
    z1 = jnp.zeros((nb, 1), f32)
    in_a = jnp.concatenate([xa_ref[...], z3, ones1, oh_a, z1, in2, in3], axis=1)
    in_b = jnp.concatenate([xb_ref[...], z3, ones1, oh_b, z1, -in2, in3], axis=1)
    x0_ref[0:nb, :] = in_a
    x0_ref[nb:2 * nb, :] = in_b
    x0 = x0_ref[...]                                    # (2nb,128) f32

    w0 = w_ref[R_W0:R_W0 + 128, :]                      # bf16 weight tiles
    w11 = w_ref[R_W11:R_W11 + 128, :]
    w12 = w_ref[R_W12:R_W12 + 128, :]
    wop = w_ref[R_WOPEN:R_WOPEN + 128, :]
    brows = w_ref[R_BROWS:R_BROWS + 16, :].astype(f32)  # row0 = b12, row1 = bopen6

    # stage 0: block-diag Conv1d (+bias) | base | onehot lookup | mirr | nomirr
    c0 = jnp.dot(x0.astype(bf16), w0, preferred_element_type=f32)      # (2nb,128)
    lanes = lax.broadcasted_iota(jnp.int32, (2 * nb, LANES), 1)
    act0 = jnp.where(lanes < F_CONV, jnp.where(c0 >= 0, c0, 0.1 * c0), c0)  # Leaky only on conv lanes
    f = jnp.where(lanes == 127, 1.0, act0)              # fc11 bias lane (W0 col 127 is all zero)

    h1 = jnp.maximum(jnp.dot(f.astype(bf16), w11, preferred_element_type=f32), 0.0)
    h2 = jnp.maximum(jnp.dot(h1.astype(bf16), w12, preferred_element_type=f32)
                     + brows[0:1, :], 0.0)
    lg = jnp.dot(h2.astype(bf16), wop, preferred_element_type=f32) + brows[1:2, :]

    # pi_open head, 6 wide: lanes 0..2 = pre-flipped head (branch a -> open_long),
    # lanes 3..5 = normal head (branch b -> open_short).  flip(softmax(z)) ==
    # softmax(flip(z)), so no in-kernel flip is needed.
    rowi = lax.broadcasted_iota(jnp.int32, (2 * nb, 3), 0)
    z = jnp.where(rowi < nb, lg[:, 0:3], lg[:, 3:6])
    m = jnp.max(z, axis=-1, keepdims=True)
    e = jnp.exp(z - m)
    p = e * pl.reciprocal(jnp.sum(e, axis=-1, keepdims=True), approx=False)
    open_0 = 0.5 * (p[0:nb, :] + p[nb:, :])             # (nb,3)

    # inday = 1 - ((idx1==5)|(idx1==7)) & (idx2==11) & (idx3==4)
    i1, i2, i3 = ids[:, 1:2], ids[:, 2:3], ids[:, 3:4]
    cond = jnp.logical_and(jnp.logical_and(jnp.logical_or(i1 == 5, i1 == 7),
                                           i2 == 11), i3 == 4)
    inday = jnp.where(cond, 0.0, 1.0)                   # (nb,1)

    # prob_value rows 0 and 2 are zeroed and replaced by constants in the
    # reference (sh = 0.9), so pi_exit / pi_exit_2 are algebraically dead.
    # Single lane-dense (nb,16) output: lanes 0..2 row0, 3..5 row1, 6..8 row2.
    c16 = lax.broadcasted_iota(jnp.int32, (nb, 16), 1)
    pat_in = (jnp.where(c16 == 0, SH, 0.0)
              + jnp.where((c16 == 1) | (c16 == 7), 1.0 - SH, 0.0)
              + jnp.where(c16 == 8, SH, 0.0))
    pat_out = jnp.where((c16 == 1) | (c16 == 4) | (c16 == 7), 1.0, 0.0)
    open16 = jnp.concatenate([z3, open_0, jnp.zeros((nb, 10), f32)], axis=1)
    out_ref[...] = inday * (pat_in + open16) + (1.0 - inday) * pat_out


# ---------------------------------------------------------------------------
# Parameters (deterministic, shapes from Net.__init__)
# ---------------------------------------------------------------------------
def init_params(key):
    ks = jax.random.split(key, 19)

    def unif(k, shape, fan_in):
        bound = 1.0 / np.sqrt(fan_in)
        return jax.random.uniform(k, shape, jnp.float32, -bound, bound)

    return {
        'conv00_w': unif(ks[0], (COUT, CIN, KLEN), CIN * KLEN),
        'conv00_b': unif(ks[1], (COUT,), CIN * KLEN),
        'conv10_w': unif(ks[2], (COUT, CIN, KLEN), CIN * KLEN),
        'conv10_b': unif(ks[3], (COUT,), CIN * KLEN),
        'fc11_w': unif(ks[4], (H1, F_IN), F_IN),
        'fc11_b': unif(ks[5], (H1,), F_IN),
        'fc12_w': unif(ks[6], (H2, H1), H1),
        'fc12_b': unif(ks[7], (H2,), H1),
        'pi_open_w': unif(ks[8], (3, H2), H2),
        'pi_open_b': unif(ks[9], (3,), H2),
        # pi_exit / pi_exit_2 exist in the module but are dead in this forward path.
        'pi_exit_w': unif(ks[10], (2, H2), H2),
        'pi_exit_b': unif(ks[11], (2,), H2),
        'pi_exit_2_w': unif(ks[12], (2, H2), H2),
        'pi_exit_2_b': unif(ks[13], (2,), H2),
        'onehot_00': jax.random.normal(ks[14], (6, 2), jnp.float32),
        'onehot_01': jax.random.normal(ks[15], (12, 2), jnp.float32),
        'onehot_02': jax.random.normal(ks[16], (12, 2), jnp.float32),
        'onehot_03': jax.random.normal(ks[17], (5, 3), jnp.float32),
        'onehot_04': jax.random.normal(ks[18], (10, 1), jnp.float32),
    }


# ---------------------------------------------------------------------------
# One-time weight packing (run once outside jit).  bf16 slab, (528,128).
# ---------------------------------------------------------------------------
def pack_weights(params):
    p = {k: np.asarray(v, np.float32) for k, v in params.items()}
    slab = np.zeros((SLAB_ROWS, LANES), np.float32)

    # stage-0 weight tile --------------------------------------------------
    wc00 = p['conv00_w'].reshape(COUT, CIN * KLEN).T           # (10,8)
    wc10 = p['conv10_w'].reshape(COUT, CIN * KLEN).T
    for i in range(NS):
        wc = wc00 if i == 0 else wc10
        slab[F_BASE * i:F_BASE * (i + 1), COUT * i:COUT * (i + 1)] = wc
    slab[50:60, 40:50] = np.eye(10, dtype=np.float32)          # base passthrough
    slab[L_BIAS, 0:F_CONV] = np.concatenate(
        [p['conv00_b']] + [p['conv10_b']] * 4)                 # conv bias row
    slab[L_OH + 0:L_OH + 6, 50:52] = p['onehot_00']            # onehot tables -> lanes 50..59
    slab[L_OH + 6:L_OH + 18, 52:54] = p['onehot_01']
    slab[L_OH + 18:L_OH + 30, 54:56] = p['onehot_02']
    slab[L_OH + 30:L_OH + 35, 56:59] = p['onehot_03']
    slab[L_OH + 35:L_OH + 45, 59:60] = p['onehot_04']
    slab[111:119, 60:68] = np.eye(8, dtype=np.float32)         # mirr   = input[2][:,1:9]
    slab[121:128, 68:75] = np.eye(7, dtype=np.float32)         # nomirr = input[3][:,2:9]

    # fc11 / fc12 / pi_open ---------------------------------------------------
    slab[R_W11:R_W11 + F_IN, :] = p['fc11_w'].T
    slab[R_W11 + 127, :] = p['fc11_b']                         # bias via constant-1 lane 127
    slab[R_W12:R_W12 + H1, 0:H2] = p['fc12_w'].T
    wopen_t = p['pi_open_w'].T                                 # (64,3)
    slab[R_WOPEN:R_WOPEN + H2, 0:3] = wopen_t[:, ::-1]         # pre-flipped head (open_long)
    slab[R_WOPEN:R_WOPEN + H2, 3:6] = wopen_t                  # normal head (open_short)
    slab[R_BROWS + 0, 0:H2] = p['fc12_b']
    slab[R_BROWS + 1, 0:3] = p['pi_open_b'][::-1]
    slab[R_BROWS + 1, 3:6] = p['pi_open_b']

    # guards for the layout tricks the kernel relies on
    assert np.all(slab[R_W0:R_W0 + 128, F_IN:] == 0.0), "stage-0 cols >=75 must stay zero"
    assert np.all(slab[R_W11 + F_IN:R_W11 + 127, :] == 0.0), "fc11 rows 75..126 must stay zero"

    return jnp.asarray(slab, dtype=jnp.bfloat16)


# ---------------------------------------------------------------------------
# Wrapper: two free reshapes + one pallas_call; slices (B,16) -> (B,3,3)
# ---------------------------------------------------------------------------
def net_forward_pallas(wslab, inputs):
    x, x_, in2, in3, idx = inputs
    b = x.shape[0]
    assert b % BM == 0
    nt = b // BM
    xa = x.reshape(b, X_LANES)
    xb = x_.reshape(b, X_LANES)

    flops = 4 * 2 * (2 * BM) * LANES * LANES * nt
    bytes_acc = int(wslab.size) * 2 + (xa.size + xb.size + in2.size + in3.size
                                       + idx.size) * 4 + b * 16 * 4

    out = pl.pallas_call(
        net_kernel,
        out_shape=jax.ShapeDtypeStruct((b, 16), jnp.float32),
        grid=(nt,),
        in_specs=[
            pl.BlockSpec((BM, 5), lambda i: (i, 0)),             # idx (int32)
            pl.BlockSpec((BM, X_LANES), lambda i: (i, 0)),       # x  reshaped
            pl.BlockSpec((BM, X_LANES), lambda i: (i, 0)),       # x_ reshaped
            pl.BlockSpec((BM, 9), lambda i: (i, 0)),             # input[2]
            pl.BlockSpec((BM, 9), lambda i: (i, 0)),             # input[3]
            pl.BlockSpec((SLAB_ROWS, LANES), lambda i: (0, 0)),  # slab: resident across steps
        ],
        out_specs=pl.BlockSpec((BM, 16), lambda i: (i, 0)),
        scratch_shapes=[pltpu.VMEM((2 * BM, LANES), jnp.float32)],
        compiler_params=pltpu.CompilerParams(dimension_semantics=("arbitrary",)),
        cost_estimate=pl.CostEstimate(flops=flops, transcendentals=2 * b * 3,
                                      bytes_accessed=bytes_acc),
    )(idx, xa, xb, in2, in3, wslab)
    return out[:, :9].reshape(b, 3, 3)                          # prob_value (B,3,3)


# ---------------------------------------------------------------------------
# Pure-JAX f32 reference (mirrors the PyTorch forward, mod == 1) for checking
# ---------------------------------------------------------------------------
def net_forward_ref(params, inputs):
    x, x_, in2, in3, idx = inputs
    b = x.shape[0]
    leaky = lambda v: jnp.where(v >= 0, v, 0.1 * v)

    def conv_cell(xx):
        outs = []
        for i in range(NS):
            w = params['conv00_w'] if i == 0 else params['conv10_w']
            bi = params['conv00_b'] if i == 0 else params['conv10_b']
            xi = xx[:, i].reshape(b, CIN * KLEN)
            outs.append(leaky(xi @ w.reshape(COUT, CIN * KLEN).T + bi))
        outs.append(xx[:, 5].reshape(b, F_BASE))
        return jnp.concatenate(outs, axis=1)

    oh = jnp.concatenate([params['onehot_00'][idx[:, 0]], params['onehot_01'][idx[:, 1]],
                          params['onehot_02'][idx[:, 2]], params['onehot_03'][idx[:, 3]],
                          params['onehot_04'][idx[:, 4]]], axis=1)
    mirr, nomirr = in2[:, 1:], in3[:, 2:]

    def seq(xx, oh_, mirr_, nomirr_):
        f = jnp.concatenate([conv_cell(xx), oh_, mirr_, nomirr_], axis=1)
        h = jax.nn.relu(f @ params['fc11_w'].T + params['fc11_b'])
        return jax.nn.relu(h @ params['fc12_w'].T + params['fc12_b'])

    y0 = seq(x, oh, mirr, nomirr)
    y0_ = seq(x_, oh.at[:, -1].set(-oh[:, -1]), -mirr, nomirr)
    open_short = jax.nn.softmax(y0_ @ params['pi_open_w'].T + params['pi_open_b'], axis=-1)
    open_long = jnp.flip(jax.nn.softmax(y0 @ params['pi_open_w'].T + params['pi_open_b'], axis=-1), axis=-1)
    open_0 = (open_short + open_long) / 2

    fidx = idx.astype(jnp.float32)
    cond = ((fidx[:, 1] == 5.0) | (fidx[:, 1] == 7.0)) & (fidx[:, 2] == 11.0) & (fidx[:, 3] == 4.0)
    inday = 1.0 - cond.astype(jnp.float32)
    i_, o_ = inday[:, None], (1.0 - inday)[:, None]
    mid = jnp.array([0., 1., 0.], jnp.float32)
    row0 = i_ * jnp.array([SH, 1 - SH, 0.], jnp.float32) + o_ * mid
    row2 = i_ * jnp.array([0., 1 - SH, SH], jnp.float32) + o_ * mid
    row1 = i_ * open_0 + o_ * mid
    return jnp.stack([row0, row1, row2], axis=1)


if __name__ == "__main__":
    key = jax.random.PRNGKey(0)
    kp, k0, k1, k2, k3, k4, k5, k6, k7, k8 = jax.random.split(key, 10)
    params = init_params(kp)
    wslab = jax.block_until_ready(pack_weights(params))   # one-time layout prep

    x = jax.random.normal(k0, (B, 6, CIN, KLEN), jnp.float32)    # input[0]
    x_ = jax.random.normal(k1, (B, 6, CIN, KLEN), jnp.float32)   # input[1]
    in2 = jax.random.normal(k2, (B, 9), jnp.float32)             # input[2] -> [:, 1:]
    in3 = jax.random.normal(k3, (B, 9), jnp.float32)             # input[3] -> [:, 2:]
    idx = jnp.stack([jax.random.randint(k4, (B,), 0, 6),
                     jax.random.randint(k5, (B,), 0, 12),
                     jax.random.randint(k6, (B,), 0, 12),
                     jax.random.randint(k7, (B,), 0, 5),
                     jax.random.randint(k8, (B,), 0, 10)], axis=1).astype(jnp.int32)
    idx = idx.at[0].set(jnp.array([0, 5, 11, 4, 0], jnp.int32))  # force one inday==0 row
    inputs = (x, x_, in2, in3, idx)

    fwd = jax.jit(net_forward_pallas)
    prob_value = jax.block_until_ready(fwd(wslab, inputs))

    ref = jax.block_until_ready(net_forward_ref(params, inputs))
    assert prob_value.shape == (B, 3, 3)
    # tolerance relaxed deliberately: weights are stored bf16 (review item);
    # probabilities agree with the f32 reference to ~1e-3.
    np.testing.assert_allclose(np.asarray(prob_value), np.asarray(ref), atol=2e-2, rtol=2e-2)

    # TODO(synk): mod==0/2/3 paths (associa(), multinomial sampling, sequential
    # position recurrence) are outside the NN hot path and not implemented.
    print("KERNEL_OK")
</pallas_src>

<mosaic_0001>
module attributes {stable_mosaic.version = 11 : i64} {
  func.func @net_kernel(%arg0: i32, %arg1: memref<8x5xi32, #tpu.memory_space<vmem>>, %arg2: memref<8x60xf32, #tpu.memory_space<vmem>>, %arg3: memref<8x60xf32, #tpu.memory_space<vmem>>, %arg4: memref<8x9xf32, #tpu.memory_space<vmem>>, %arg5: memref<8x9xf32, #tpu.memory_space<vmem>>, %arg6: memref<528x128xbf16, #tpu.memory_space<vmem>>, %arg7: memref<8x16xf32, #tpu.memory_space<vmem>>, %arg8: memref<16x128xf32, #tpu.memory_space<vmem>>) attributes {dimension_semantics = [#tpu.dimension_semantics<arbitrary>], iteration_bounds = array<i64: 1>, scalar_prefetch = 0 : i64, scratch_operands = 1 : i64, tpu.core_type = #tpu.core_type<tc>, window_params = [{transform_indices = @transform_0, window_bounds = array<i64: 8, 5>}, {transform_indices = @transform_1, window_bounds = array<i64: 8, 60>}, {transform_indices = @transform_2, window_bounds = array<i64: 8, 60>}, {transform_indices = @transform_3, window_bounds = array<i64: 8, 9>}, {transform_indices = @transform_4, window_bounds = array<i64: 8, 9>}, {pipeline_mode = #tpu.pipeline_mode<synchronous>, transform_indices = @transform_5, window_bounds = array<i64: 528, 128>}, {transform_indices = @transform_6, window_bounds = array<i64: 8, 16>}]} {
    %c0 = arith.constant 0 : index
    %c0_0 = arith.constant 0 : index
    %0 = vector.load %arg1[%c0, %c0_0] : memref<8x5xi32, #tpu.memory_space<vmem>>, vector<8x5xi32>
    %c0_1 = arith.constant 0 : index
    %c0_2 = arith.constant 0 : index
    %1 = vector.load %arg4[%c0_1, %c0_2] : memref<8x9xf32, #tpu.memory_space<vmem>>, vector<8x9xf32>
    %c0_3 = arith.constant 0 : index
    %c0_4 = arith.constant 0 : index
    %2 = vector.load %arg5[%c0_3, %c0_4] : memref<8x9xf32, #tpu.memory_space<vmem>>, vector<8x9xf32>
    %3 = tpu.iota {dimensions = array<i32: 1>} : vector<8x45xi32>
    %cst = arith.constant 0.000000e+00 : f32
    %4 = vector.broadcast %cst : f32 to vector<8x45xf32>
    %5 = vector.extract_strided_slice %0 {offsets = [0, 0], sizes = [8, 1], strides = [1, 1]} : vector<8x5xi32> to vector<8x1xi32>
    %c0_i32 = arith.constant 0 : i32
    %6 = vector.broadcast %c0_i32 : i32 to vector<8x1xi32>
    %7 = arith.addi %5, %6 : vector<8x1xi32>
    %8 = vector.broadcast %7 : vector<8x1xi32> to vector<8x45xi32>
    %9 = arith.cmpi eq, %3, %8 : vector<8x45xi32>
    %cst_5 = arith.constant 1.000000e+00 : f32
    %cst_6 = arith.constant 0.000000e+00 : f32
    %10 = vector.broadcast %cst_5 : f32 to vector<8x45xf32>
    %11 = vector.broadcast %cst_6 : f32 to vector<8x45xf32>
    %12 = arith.select %9, %10, %11 : vector<8x45xi1>, vector<8x45xf32>
    %13 = arith.addf %4, %12 : vector<8x45xf32>
    %14 = vector.extract_strided_slice %0 {offsets = [0, 1], sizes = [8, 1], strides = [1, 1]} : vector<8x5xi32> to vector<8x1xi32>
    %c6_i32 = arith.constant 6 : i32
    %15 = vector.broadcast %c6_i32 : i32 to vector<8x1xi32>
    %16 = arith.addi %14, %15 : vector<8x1xi32>
    %17 = vector.broadcast %16 : vector<8x1xi32> to vector<8x45xi32>
    %18 = arith.cmpi eq, %3, %17 : vector<8x45xi32>
    %cst_7 = arith.constant 1.000000e+00 : f32
    %cst_8 = arith.constant 0.000000e+00 : f32
    %19 = vector.broadcast %cst_7 : f32 to vector<8x45xf32>
    %20 = vector.broadcast %cst_8 : f32 to vector<8x45xf32>
    %21 = arith.select %18, %19, %20 : vector<8x45xi1>, vector<8x45xf32>
    %22 = arith.addf %13, %21 : vector<8x45xf32>
    %23 = vector.extract_strided_slice %0 {offsets = [0, 2], sizes = [8, 1], strides = [1, 1]} : vector<8x5xi32> to vector<8x1xi32>
    %c18_i32 = arith.constant 18 : i32
    %24 = vector.broadcast %c18_i32 : i32 to vector<8x1xi32>
    %25 = arith.addi %23, %24 : vector<8x1xi32>
    %26 = vector.broadcast %25 : vector<8x1xi32> to vector<8x45xi32>
    %27 = arith.cmpi eq, %3, %26 : vector<8x45xi32>
    %cst_9 = arith.constant 1.000000e+00 : f32
    %cst_10 = arith.constant 0.000000e+00 : f32
    %28 = vector.broadcast %cst_9 : f32 to vector<8x45xf32>
    %29 = vector.broadcast %cst_10 : f32 to vector<8x45xf32>
    %30 = arith.select %27, %28, %29 : vector<8x45xi1>, vector<8x45xf32>
    %31 = arith.addf %22, %30 : vector<8x45xf32>
    %32 = vector.extract_strided_slice %0 {offsets = [0, 3], sizes = [8, 1], strides = [1, 1]} : vector<8x5xi32> to vector<8x1xi32>
    %c30_i32 = arith.constant 30 : i32
    %33 = vector.broadcast %c30_i32 : i32 to vector<8x1xi32>
    %34 = arith.addi %32, %33 : vector<8x1xi32>
    %35 = vector.broadcast %34 : vector<8x1xi32> to vector<8x45xi32>
    %36 = arith.cmpi eq, %3, %35 : vector<8x45xi32>
    %cst_11 = arith.constant 1.000000e+00 : f32
    %cst_12 = arith.constant 0.000000e+00 : f32
    %37 = vector.broadcast %cst_11 : f32 to vector<8x45xf32>
    %38 = vector.broadcast %cst_12 : f32 to vector<8x45xf32>
    %39 = arith.select %36, %37, %38 : vector<8x45xi1>, vector<8x45xf32>
    %40 = arith.addf %31, %39 : vector<8x45xf32>
    %41 = vector.extract_strided_slice %0 {offsets = [0, 4], sizes = [8, 1], strides = [1, 1]} : vector<8x5xi32> to vector<8x1xi32>
    %c35_i32 = arith.constant 35 : i32
    %42 = vector.broadcast %c35_i32 : i32 to vector<8x1xi32>
    %43 = arith.addi %41, %42 : vector<8x1xi32>
    %44 = vector.broadcast %43 : vector<8x1xi32> to vector<8x45xi32>
    %45 = arith.cmpi eq, %3, %44 : vector<8x45xi32>
    %cst_13 = arith.constant 1.000000e+00 : f32
    %cst_14 = arith.constant 0.000000e+00 : f32
    %46 = vector.broadcast %cst_13 : f32 to vector<8x45xf32>
    %47 = vector.broadcast %cst_14 : f32 to vector<8x45xf32>
    %48 = arith.select %45, %46, %47 : vector<8x45xi1>, vector<8x45xf32>
    %49 = arith.addf %40, %48 : vector<8x45xf32>
    %50 = vector.extract_strided_slice %0 {offsets = [0, 4], sizes = [8, 1], strides = [1, 1]} : vector<8x5xi32> to vector<8x1xi32>
    %c35_i32_15 = arith.constant 35 : i32
    %51 = vector.broadcast %c35_i32_15 : i32 to vector<8x1xi32>
    %52 = arith.addi %50, %51 : vector<8x1xi32>
    %53 = vector.broadcast %52 : vector<8x1xi32> to vector<8x45xi32>
    %54 = arith.cmpi eq, %3, %53 : vector<8x45xi32>
    %cst_16 = arith.constant 1.000000e+00 : f32
    %cst_17 = arith.constant 0.000000e+00 : f32
    %55 = vector.broadcast %cst_16 : f32 to vector<8x45xf32>
    %56 = vector.broadcast %cst_17 : f32 to vector<8x45xf32>
    %57 = arith.select %54, %55, %56 : vector<8x45xi1>, vector<8x45xf32>
    %cst_18 = arith.constant 2.000000e+00 : f32
    %58 = vector.broadcast %cst_18 : f32 to vector<8x45xf32>
    %59 = arith.mulf %58, %57 : vector<8x45xf32>
    %60 = arith.subf %49, %59 : vector<8x45xf32>
    %cst_19 = arith.constant 1.000000e+00 : f32
    %61 = vector.broadcast %cst_19 : f32 to vector<8x1xf32>
    %cst_20 = arith.constant 0.000000e+00 : f32
    %62 = vector.broadcast %cst_20 : f32 to vector<8x3xf32>
    %cst_21 = arith.constant 0.000000e+00 : f32
    %63 = vector.broadcast %cst_21 : f32 to vector<8x1xf32>
    %c0_22 = arith.constant 0 : index
    %c0_23 = arith.constant 0 : index
    %64 = vector.load %arg2[%c0_22, %c0_23] : memref<8x60xf32, #tpu.memory_space<vmem>>, vector<8x60xf32>
    %65 = tpu.concatenate %64, %62, %61, %49, %63, %1, %2 in 1 : vector<8x60xf32>, vector<8x3xf32>, vector<8x1xf32>, vector<8x45xf32>, vector<8x1xf32>, vector<8x9xf32>, vector<8x9xf32> -> vector<8x128xf32>
    %c0_24 = arith.constant 0 : index
    %c0_25 = arith.constant 0 : index
    %66 = vector.load %arg3[%c0_24, %c0_25] : memref<8x60xf32, #tpu.memory_space<vmem>>, vector<8x60xf32>
    %cst_26 = arith.constant 0.000000e+00 : f32
    %67 = vector.broadcast %cst_26 : f32 to vector<8x9xf32>
    %68 = arith.subf %67, %1 : vector<8x9xf32>
    %69 = tpu.concatenate %66, %62, %61, %60, %63, %68, %2 in 1 : vector<8x60xf32>, vector<8x3xf32>, vector<8x1xf32>, vector<8x45xf32>, vector<8x1xf32>, vector<8x9xf32>, vector<8x9xf32> -> vector<8x128xf32>
    %c0_27 = arith.constant 0 : index
    %c0_28 = arith.constant 0 : index
    %70 = vector.load %arg8[%c0_27, %c0_28] : memref<16x128xf32, #tpu.memory_space<vmem>>, vector<8x128xf32>
    tpu.vector_store %arg8[%c0_27, %c0_28], %65 {strides = array<i32>} : memref<16x128xf32, #tpu.memory_space<vmem>>, vector<8x128xf32>,
    %c8 = arith.constant 8 : index
    %c0_29 = arith.constant 0 : index
    %71 = vector.load %arg8[%c8, %c0_29] : memref<16x128xf32, #tpu.memory_space<vmem>>, vector<8x128xf32>
    tpu.vector_store %arg8[%c8, %c0_29], %69 {strides = array<i32>} : memref<16x128xf32, #tpu.memory_space<vmem>>, vector<8x128xf32>,
    %c0_30 = arith.constant 0 : index
    %c0_31 = arith.constant 0 : index
    %72 = vector.load %arg8[%c0_30, %c0_31] : memref<16x128xf32, #tpu.memory_space<vmem>>, vector<16x128xf32>
    %c0_32 = arith.constant 0 : index
    %c0_33 = arith.constant 0 : index
    %73 = vector.load %arg6[%c0_32, %c0_33] : memref<528x128xbf16, #tpu.memory_space<vmem>>, vector<128x128xbf16>
    %c128 = arith.constant 128 : index
    %c0_34 = arith.constant 0 : index
    %74 = vector.load %arg6[%c128, %c0_34] : memref<528x128xbf16, #tpu.memory_space<vmem>>, vector<128x128xbf16>
    %c256 = arith.constant 256 : index
    %c0_35 = arith.constant 0 : index
    %75 = vector.load %arg6[%c256, %c0_35] : memref<528x128xbf16, #tpu.memory_space<vmem>>, vector<128x128xbf16>
    %c384 = arith.constant 384 : index
    %c0_36 = arith.constant 0 : index
    %76 = vector.load %arg6[%c384, %c0_36] : memref<528x128xbf16, #tpu.memory_space<vmem>>, vector<128x128xbf16>
    %c512 = arith.constant 512 : index
    %c0_37 = arith.constant 0 : index
    %77 = vector.load %arg6[%c512, %c0_37] : memref<528x128xbf16, #tpu.memory_space<vmem>>, vector<16x128xbf16>
    %78 = arith.extf %77 : vector<16x128xbf16> to vector<16x128xf32>
    %79 = arith.truncf %72 : vector<16x128xf32> to vector<16x128xbf16>
    %cst_38 = arith.constant dense<0.000000e+00> : vector<16x128xf32>
    %80 = tpu.matmul %79, %73, %cst_38 {dimension_numbers = #tpu.dot_dimension_numbers<[1], [0], [0], [1], [0, 0, 1, 1], [], []>} : vector<16x128xbf16>, vector<128x128xbf16>, vector<16x128xf32> -> vector<16x128xf32>
    %81 = tpu.iota {dimensions = array<i32: 1>} : vector<16x128xi32>
    %c40_i32 = arith.constant 40 : i32
    %82 = vector.broadcast %c40_i32 : i32 to vector<16x128xi32>
    %83 = arith.cmpi slt, %81, %82 : vector<16x128xi32>
    %cst_39 = arith.constant 0.000000e+00 : f32
    %84 = vector.broadcast %cst_39 : f32 to vector<16x128xf32>
    %85 = arith.cmpf oge, %80, %84 : vector<16x128xf32>
    %cst_40 = arith.constant 1.000000e-01 : f32
    %86 = vector.broadcast %cst_40 : f32 to vector<16x128xf32>
    %87 = arith.mulf %86, %80 : vector<16x128xf32>
    %88 = arith.select %85, %80, %87 : vector<16x128xi1>, vector<16x128xf32>
    %89 = arith.select %83, %88, %80 : vector<16x128xi1>, vector<16x128xf32>
    %c127_i32 = arith.constant 127 : i32
    %90 = vector.broadcast %c127_i32 : i32 to vector<16x128xi32>
    %91 = arith.cmpi eq, %81, %90 : vector<16x128xi32>
    %cst_41 = arith.constant 1.000000e+00 : f32
    %92 = vector.broadcast %cst_41 : f32 to vector<16x128xf32>
    %93 = arith.select %91, %92, %89 : vector<16x128xi1>, vector<16x128xf32>
    %94 = arith.truncf %93 : vector<16x128xf32> to vector<16x128xbf16>
    %cst_42 = arith.constant dense<0.000000e+00> : vector<16x128xf32>
    %95 = tpu.matmul %94, %74, %cst_42 {dimension_numbers = #tpu.dot_dimension_numbers<[1], [0], [0], [1], [0, 0, 1, 1], [], []>} : vector<16x128xbf16>, vector<128x128xbf16>, vector<16x128xf32> -> vector<16x128xf32>
    %cst_43 = arith.constant 0.000000e+00 : f32
    %96 = vector.broadcast %cst_43 : f32 to vector<16x128xf32>
    %97 = arith.maximumf %95, %96 : vector<16x128xf32>
    %98 = arith.truncf %97 : vector<16x128xf32> to vector<16x128xbf16>
    %cst_44 = arith.constant dense<0.000000e+00> : vector<16x128xf32>
    %99 = tpu.matmul %98, %75, %cst_44 {dimension_numbers = #tpu.dot_dimension_numbers<[1], [0], [0], [1], [0, 0, 1, 1], [], []>} : vector<16x128xbf16>, vector<128x128xbf16>, vector<16x128xf32> -> vector<16x128xf32>
    %100 = vector.extract_strided_slice %78 {offsets = [0, 0], sizes = [1, 128], strides = [1, 1]} : vector<16x128xf32> to vector<1x128xf32>
    %101 = vector.broadcast %100 : vector<1x128xf32> to vector<16x128xf32>
    %102 = arith.addf %99, %101 : vector<16x128xf32>
    %cst_45 = arith.constant 0.000000e+00 : f32
    %103 = vector.broadcast %cst_45 : f32 to vector<16x128xf32>
    %104 = arith.maximumf %102, %103 : vector<16x128xf32>
    %105 = arith.truncf %104 : vector<16x128xf32> to vector<16x128xbf16>
    %cst_46 = arith.constant dense<0.000000e+00> : vector<16x128xf32>
    %106 = tpu.matmul %105, %76, %cst_46 {dimension_numbers = #tpu.dot_dimension_numbers<[1], [0], [0], [1], [0, 0, 1, 1], [], []>} : vector<16x128xbf16>, vector<128x128xbf16>, vector<16x128xf32> -> vector<16x128xf32>
    %107 = vector.extract_strided_slice %78 {offsets = [1, 0], sizes = [1, 128], strides = [1, 1]} : vector<16x128xf32> to vector<1x128xf32>
    %108 = vector.broadcast %107 : vector<1x128xf32> to vector<16x128xf32>
    %109 = arith.addf %106, %108 : vector<16x128xf32>
    %110 = tpu.iota {dimensions = array<i32: 0>} : vector<16x3xi32>
    %c8_i32 = arith.constant 8 : i32
    %111 = vector.broadcast %c8_i32 : i32 to vector<16x3xi32>
    %112 = arith.cmpi slt, %110, %111 : vector<16x3xi32>
    %113 = vector.extract_strided_slice %109 {offsets = [0, 0], sizes = [16, 3], strides = [1, 1]} : vector<16x128xf32> to vector<16x3xf32>
    %114 = vector.extract_strided_slice %109 {offsets = [0, 3], sizes = [16, 3], strides = [1, 1]} : vector<16x128xf32> to vector<16x3xf32>
    %115 = arith.select %112, %113, %114 : vector<16x3xi1>, vector<16x3xf32>
    %cst_47 = arith.constant dense<0xFF800000> : vector<16xf32>
    %116 = vector.multi_reduction <maximumf>, %115, %cst_47 [1] : vector<16x3xf32> to vector<16xf32>
    %117 = vector.shape_cast %116 : vector<16xf32> to vector<16x1xf32>
    %118 = vector.broadcast %117 : vector<16x1xf32> to vector<16x3xf32>
    %119 = arith.subf %115, %118 : vector<16x3xf32>
    %120 = math.exp %119 : vector<16x3xf32>
    %cst_48 = arith.constant dense<0.000000e+00> : vector<16xf32>
    %121 = vector.multi_reduction <add>, %120, %cst_48 [1] : vector<16x3xf32> to vector<16xf32>
    %122 = vector.shape_cast %121 : vector<16xf32> to vector<16x1xf32>
    %123 = tpu.reciprocal %122 : vector<16x1xf32> -> vector<16x1xf32>
    %124 = vector.broadcast %123 : vector<16x1xf32> to vector<16x3xf32>
    %125 = arith.mulf %120, %124 : vector<16x3xf32>
    %126 = vector.extract_strided_slice %125 {offsets = [0, 0], sizes = [8, 3], strides = [1, 1]} : vector<16x3xf32> to vector<8x3xf32>
    %127 = vector.extract_strided_slice %125 {offsets = [8, 0], sizes = [8, 3], strides = [1, 1]} : vector<16x3xf32> to vector<8x3xf32>
    %128 = arith.addf %126, %127 : vector<8x3xf32>
    %cst_49 = arith.constant 5.000000e-01 : f32
    %129 = vector.broadcast %cst_49 : f32 to vector<8x3xf32>
    %130 = arith.mulf %129, %128 : vector<8x3xf32>
    %131 = vector.extract_strided_slice %0 {offsets = [0, 1], sizes = [8, 1], strides = [1, 1]} : vector<8x5xi32> to vector<8x1xi32>
    %132 = vector.extract_strided_slice %0 {offsets = [0, 2], sizes = [8, 1], strides = [1, 1]} : vector<8x5xi32> to vector<8x1xi32>
    %133 = vector.extract_strided_slice %0 {offsets = [0, 3], sizes = [8, 1], strides = [1, 1]} : vector<8x5xi32> to vector<8x1xi32>
    %c5_i32 = arith.constant 5 : i32
    %134 = vector.broadcast %c5_i32 : i32 to vector<8x1xi32>
    %135 = arith.cmpi eq, %131, %134 : vector<8x1xi32>
    %c7_i32 = arith.constant 7 : i32
    %136 = vector.broadcast %c7_i32 : i32 to vector<8x1xi32>
    %137 = arith.cmpi eq, %131, %136 : vector<8x1xi32>
    %138 = arith.ori %135, %137 : vector<8x1xi1>
    %c11_i32 = arith.constant 11 : i32
    %139 = vector.broadcast %c11_i32 : i32 to vector<8x1xi32>
    %140 = arith.cmpi eq, %132, %139 : vector<8x1xi32>
    %141 = arith.andi %138, %140 : vector<8x1xi1>
    %c4_i32 = arith.constant 4 : i32
    %142 = vector.broadcast %c4_i32 : i32 to vector<8x1xi32>
    %143 = arith.cmpi eq, %133, %142 : vector<8x1xi32>
    %144 = arith.andi %141, %143 : vector<8x1xi1>
    %cst_50 = arith.constant 0.000000e+00 : f32
    %cst_51 = arith.constant 1.000000e+00 : f32
    %145 = vector.broadcast %cst_50 : f32 to vector<8x1xf32>
    %146 = vector.broadcast %cst_51 : f32 to vector<8x1xf32>
    %147 = arith.select %144, %145, %146 : vector<8x1xi1>, vector<8x1xf32>
    %148 = tpu.iota {dimensions = array<i32: 1>} : vector<8x16xi32>
    %c0_i32_52 = arith.constant 0 : i32
    %149 = vector.broadcast %c0_i32_52 : i32 to vector<8x16xi32>
    %150 = arith.cmpi eq, %148, %149 : vector<8x16xi32>
    %cst_53 = arith.constant 0.899999976 : f32
    %cst_54 = arith.constant 0.000000e+00 : f32
    %151 = vector.broadcast %cst_53 : f32 to vector<8x16xf32>
    %152 = vector.broadcast %cst_54 : f32 to vector<8x16xf32>
    %153 = arith.select %150, %151, %152 : vector<8x16xi1>, vector<8x16xf32>
    %c1_i32 = arith.constant 1 : i32
    %154 = vector.broadcast %c1_i32 : i32 to vector<8x16xi32>
    %155 = arith.cmpi eq, %148, %154 : vector<8x16xi32>
    %c7_i32_55 = arith.constant 7 : i32
    %156 = vector.broadcast %c7_i32_55 : i32 to vector<8x16xi32>
    %157 = arith.cmpi eq, %148, %156 : vector<8x16xi32>
    %158 = arith.ori %155, %157 : vector<8x16xi1>
    %cst_56 = arith.constant 1.000000e-01 : f32
    %cst_57 = arith.constant 0.000000e+00 : f32
    %159 = vector.broadcast %cst_56 : f32 to vector<8x16xf32>
    %160 = vector.broadcast %cst_57 : f32 to vector<8x16xf32>
    %161 = arith.select %158, %159, %160 : vector<8x16xi1>, vector<8x16xf32>
    %162 = arith.addf %153, %161 : vector<8x16xf32>
    %c8_i32_58 = arith.constant 8 : i32
    %163 = vector.broadcast %c8_i32_58 : i32 to vector<8x16xi32>
    %164 = arith.cmpi eq, %148, %163 : vector<8x16xi32>
    %cst_59 = arith.constant 0.899999976 : f32
    %cst_60 = arith.constant 0.000000e+00 : f32
    %165 = vector.broadcast %cst_59 : f32 to vector<8x16xf32>
    %166 = vector.broadcast %cst_60 : f32 to vector<8x16xf32>
    %167 = arith.select %164, %165, %166 : vector<8x16xi1>, vector<8x16xf32>
    %168 = arith.addf %162, %167 : vector<8x16xf32>
    %c1_i32_61 = arith.constant 1 : i32
    %169 = vector.broadcast %c1_i32_61 : i32 to vector<8x16xi32>
    %170 = arith.cmpi eq, %148, %169 : vector<8x16xi32>
    %c4_i32_62 = arith.constant 4 : i32
    %171 = vector.broadcast %c4_i32_62 : i32 to vector<8x16xi32>
    %172 = arith.cmpi eq, %148, %171 : vector<8x16xi32>
    %173 = arith.ori %170, %172 : vector<8x16xi1>
    %c7_i32_63 = arith.constant 7 : i32
    %174 = vector.broadcast %c7_i32_63 : i32 to vector<8x16xi32>
    %175 = arith.cmpi eq, %148, %174 : vector<8x16xi32>
    %176 = arith.ori %173, %175 : vector<8x16xi1>
    %cst_64 = arith.constant 1.000000e+00 : f32
    %cst_65 = arith.constant 0.000000e+00 : f32
    %177 = vector.broadcast %cst_64 : f32 to vector<8x16xf32>
    %178 = vector.broadcast %cst_65 : f32 to vector<8x16xf32>
    %179 = arith.select %176, %177, %178 : vector<8x16xi1>, vector<8x16xf32>
    %cst_66 = arith.constant 0.000000e+00 : f32
    %180 = vector.broadcast %cst_66 : f32 to vector<8x10xf32>
    %181 = tpu.concatenate %62, %130, %180 in 1 : vector<8x3xf32>, vector<8x3xf32>, vector<8x10xf32> -> vector<8x16xf32>
    %182 = arith.addf %168, %181 : vector<8x16xf32>
    %183 = vector.broadcast %147 : vector<8x1xf32> to vector<8x16xf32>
    %184 = arith.mulf %183, %182 : vector<8x16xf32>
    %cst_67 = arith.constant 1.000000e+00 : f32
    %185 = vector.broadcast %cst_67 : f32 to vector<8x1xf32>
    %186 = arith.subf %185, %147 : vector<8x1xf32>
    %187 = vector.broadcast %186 : vector<8x1xf32> to vector<8x16xf32>
    %188 = arith.mulf %187, %179 : vector<8x16xf32>
    %189 = arith.addf %184, %188 : vector<8x16xf32>
    %c0_68 = arith.constant 0 : index
    %c0_69 = arith.constant 0 : index
    %190 = vector.load %arg7[%c0_68, %c0_69] : memref<8x16xf32, #tpu.memory_space<vmem>>, vector<8x16xf32>
    tpu.vector_store %arg7[%c0_68, %c0_69], %189 {strides = array<i32>} : memref<8x16xf32, #tpu.memory_space<vmem>>, vector<8x16xf32>,
    return
  }
  func.func @transform_0(%arg0: i32) -> (i32, i32) {
    %c0_i32 = arith.constant 0 : i32
    %c0_i32_0 = arith.constant 0 : i32
    return %arg0, %c0_i32 : i32, i32
  }
  func.func @transform_1(%arg0: i32) -> (i32, i32) {
    %c0_i32 = arith.constant 0 : i32
    %c0_i32_0 = arith.constant 0 : i32
    return %arg0, %c0_i32 : i32, i32
  }
  func.func @transform_2(%arg0: i32) -> (i32, i32) {
    %c0_i32 = arith.constant 0 : i32
    %c0_i32_0 = arith.constant 0 : i32
    return %arg0, %c0_i32 : i32, i32
  }
  func.func @transform_3(%arg0: i32) -> (i32, i32) {
    %c0_i32 = arith.constant 0 : i32
    %c0_i32_0 = arith.constant 0 : i32
    return %arg0, %c0_i32 : i32, i32
  }
  func.func @transform_4(%arg0: i32) -> (i32, i32) {
    %c0_i32 = arith.constant 0 : i32
    %c0_i32_0 = arith.constant 0 : i32
    return %arg0, %c0_i32 : i32, i32
  }
  func.func @transform_5(%arg0: i32) -> (i32, i32) {
    %c0_i32 = arith.constant 0 : i32
    %c0_i32_0 = arith.constant 0 : i32
    %c0_i32_1 = arith.constant 0 : i32
    return %c0_i32, %c0_i32_0 : i32, i32
  }
  func.func @transform_6(%arg0: i32) -> (i32, i32) {
    %c0_i32 = arith.constant 0 : i32
    %c0_i32_0 = arith.constant 0 : i32
    return %arg0, %c0_i32 : i32, i32
  }
}

</mosaic_0001>

<llo_original>
// kernel: net_forward_pallas.1
$region0: #{net_forward_pallas.1}
  #allocation0 [shape = 'u32[]', space=smem, size = 0x4, offset = 0x4, fixed_abs, tag = 'smem constant byte address 0x4 - core index']
  #allocation1 [shape = 'u32[144,128]{1,0:T(1,128)}', space=vmem, size = 0x12000, scoped, tag = 'internal scratch']
  #allocation2 [shape = 'f32[16,128]{1,0:T(8,128)}', space=vmem, size = 0x2000, scoped, tag = 'scratch operand']
  %s0 = inlined_call_operand.vmem [shape: s32[8,5], index: 0, kind: input, shape index: {}]
  %s1 = inlined_call_operand.vmem [shape: f32[8,60], index: 1, kind: input, shape index: {}]
  %s2 = inlined_call_operand.vmem [shape: f32[8,60], index: 2, kind: input, shape index: {}]
  %s3 = inlined_call_operand.vmem [shape: f32[8,9], index: 3, kind: input, shape index: {}]
  %s4 = inlined_call_operand.vmem [shape: f32[8,9], index: 4, kind: input, shape index: {}]
  %s5 = inlined_call_operand.vmem [shape: bf16[528,128], index: 5, kind: input, shape index: {}]
  %s6 = inlined_call_operand.vmem [shape: f32[8,16], index: 6, kind: output, shape index: {}]
  %s7 = sld [smem:[#allocation0]]
  $region34: #{net_forward_pallas.1} parent=0
    _
  %s9 = ssub.s32 1, %s7
  %s10 = scalar_select 0, %s9, %s7
  // Predicated region
  $region2: #{net_forward_pallas.1} parent=0 // pred_check
    _
  $region3: #{net_forward_pallas.1} parent=0 // pred_check_branch
    %12 = sbr.rel (0) target = $region5
  $region4: #{net_forward_pallas.1} parent=0 // pred_region
    _
  $region5: #{net_forward_pallas.1} parent=0 // pred_fallthru
    _
  // Predicated region
  $region6: #{net_forward_pallas.1} parent=0 // pred_check
    _
  $region7: #{net_forward_pallas.1} parent=0 // pred_check_branch
    %14 = sbr.rel (0) target = $region9
  $region8: #{net_forward_pallas.1} parent=0 // pred_region
    _
  $region9: #{net_forward_pallas.1} parent=0 // pred_fallthru
    _
  // Predicated region
  $region10: #{net_forward_pallas.1} parent=0 // pred_check
    _
  $region11: #{net_forward_pallas.1} parent=0 // pred_check_branch
    %16 = sbr.rel (0) target = $region13
  $region12: #{net_forward_pallas.1} parent=0 // pred_region
    _
  $region13: #{net_forward_pallas.1} parent=0 // pred_fallthru
    _
  // Predicated region
  $region14: #{net_forward_pallas.1} parent=0 // pred_check
    _
  $region15: #{net_forward_pallas.1} parent=0 // pred_check_branch
    %18 = sbr.rel (0) target = $region17
  $region16: #{net_forward_pallas.1} parent=0 // pred_region
    _
  $region17: #{net_forward_pallas.1} parent=0 // pred_fallthru
    _
  // Predicated region
  $region18: #{net_forward_pallas.1} parent=0 // pred_check
    _
  $region19: #{net_forward_pallas.1} parent=0 // pred_check_branch
    %20 = sbr.rel (0) target = $region21
  $region20: #{net_forward_pallas.1} parent=0 // pred_region
    _
  $region21: #{net_forward_pallas.1} parent=0 // pred_fallthru
    _
  // Predicated region
  $region22: #{net_forward_pallas.1} parent=0 // pred_check
    _
  $region23: #{net_forward_pallas.1} parent=0 // pred_check_branch
    %22 = sbr.rel (0) target = $region25
  $region24: #{net_forward_pallas.1} parent=0 // pred_region
    _
  $region25: #{net_forward_pallas.1} parent=0 // pred_fallthru
    _
  %v24 = vld [vmem:[%s0] sm:$0xff]
  %v25 = vld [vmem:[%s3] sm:$0xff]
  %v26 = vld [vmem:[%s4] sm:$0xff]
  %v27 = vlaneseq
  %v28 = vand.u32 %v27, 127
  %29 = vset.pattern.permute.xlu0 0
  %30 = vperm.xlu0 %29, %v24
  %v31 = vpop.permute.xlu0 %30
  %vm32 = vcmp.eq.s32.totalorder %v28, %v31
  %v33 = vsel %vm32, 1.0, 0.0
  %v34 = vadd.f32 %v33, 0.0
  %v35 = vadd.s32 %v24, 6
  %36 = vset.pattern.permute.xlu0 1
  %37 = vperm.xlu0 %36, %v35
  %v38 = vpop.permute.xlu0 %37
  %vm39 = vcmp.eq.s32.totalorder %v28, %v38
  %v40 = vsel %vm39, 1.0, 0.0
  %v41 = vadd.f32 %v34, %v40
  %v42 = vadd.s32 %v24, 18
  %43 = vset.pattern.permute.xlu0 2
  %44 = vperm.xlu0 %43, %v42
  %v45 = vpop.permute.xlu0 %44
  %vm46 = vcmp.eq.s32.totalorder %v28, %v45
  %v47 = vsel %vm46, 1.0, 0.0
  %v48 = vadd.f32 %v41, %v47
  %v49 = vadd.s32 %v24, 30
  %50 = vset.pattern.permute.xlu0 3
  %51 = vperm.xlu0 %50, %v49
  %v52 = vpop.permute.xlu0 %51
  %vm53 = vcmp.eq.s32.totalorder %v28, %v52
  %v54 = vsel %vm53, 1.0, 0.0
  %v55 = vadd.f32 %v48, %v54
  %v56 = vadd.s32 %v24, 35
  %57 = vset.pattern.permute.xlu0 4
  %58 = vperm.xlu0 %57, %v56
  %v59 = vpop.permute.xlu0 %58
  %vm60 = vcmp.eq.s32.totalorder %v28, %v59
  %v61 = vsel %vm60, 1.0, 0.0
  %v62 = vadd.f32 %v55, %v61
  %v63 = vmul.f32 %v61, 2.0
  %v64 = vsub.f32 %v62, %v63
  %v65 = vld [vmem:[%s1] sm:$0xff]
  %67 = vrot.lane.b32.xlu0 %v62, 64
  %v68 = vpop.permute.xlu0 %67
  %71 = vrot.lane.b32.xlu0 %v25, 110
  %v72 = vpop.permute.xlu0 %71
  %75 = vrot.lane.b32.xlu0 %v26, 119
  %v76 = vpop.permute.xlu0 %75
  %vm78 = vcmask 490496
  %v79 = vsel %vm78, %v65, 0.0
  %vm80 = vcmask 515072
  %v81 = vsel %vm80, %v79, 1.0
  %vm82 = vcmask 523264
  %v83 = vsel %vm82, %v81, %v68
  %vm84 = vcmask 891904
  %v85 = vsel %vm84, %v83, 0.0
  %vm86 = vcmask 900096
  %v87 = vsel %vm86, %v85, %v72
  %vm88 = vcmask 973824
  %v89 = vsel %vm88, %v87, %v76
  %v90 = vld [vmem:[%s2] sm:$0xff]
  %v91 = vsub.f32 0.0, %v25
  %93 = vrot.lane.b32.xlu0 %v64, 64
  %v94 = vpop.permute.xlu0 %93
  %97 = vrot.lane.b32.xlu0 %v91, 110
  %v98 = vpop.permute.xlu0 %97
  %v100 = vsel %vm78, %v90, 0.0
  %v101 = vsel %vm80, %v100, 1.0
  %v102 = vsel %vm82, %v101, %v94
  %v103 = vsel %vm84, %v102, 0.0
  %v104 = vsel %vm86, %v103, %v98
  %v105 = vsel %vm88, %v104, %v76
  %106 = vst [vmem:[#allocation2] sm:$0xff] %v89
  %107 = vst [vmem:[#allocation2 + $0x8] sm:$0xff] %v105
  %v108 = vld [vmem:[#allocation2] sm:$0xff]
  %v109 = vld [vmem:[#allocation2 + $0x8] sm:$0xff]
  %v110 = vld [vmem:[%s5] sm:$0xf]
  %v111 = vld [vmem:[%s5 + $0x4] sm:$0xf]
  %v112 = vld [vmem:[%s5 + $0x8] sm:$0xf]
  %v113 = vld [vmem:[%s5 + $0xc] sm:$0xf]
  %v114 = vld [vmem:[%s5 + $0x10] sm:$0xf]
  %v115 = vld [vmem:[%s5 + $0x14] sm:$0xf]
  %v116 = vld [vmem:[%s5 + $0x18] sm:$0xf]
  %v117 = vld [vmem:[%s5 + $0x1c] sm:$0xf]
  %v118 = vld [vmem:[%s5 + $0x20] sm:$0xf]
  %v119 = vld [vmem:[%s5 + $0x24] sm:$0xf]
  %v120 = vld [vmem:[%s5 + $0x28] sm:$0xf]
  %v121 = vld [vmem:[%s5 + $0x2c] sm:$0xf]
  %v122 = vld [vmem:[%s5 + $0x30] sm:$0xf]
  %v123 = vld [vmem:[%s5 + $0x34] sm:$0xf]
  %v124 = vld [vmem:[%s5 + $0x38] sm:$0xf]
  %v125 = vld [vmem:[%s5 + $0x3c] sm:$0xf]
  %v126 = vld [vmem:[%s5 + $0x40] sm:$0xf]
  %v127 = vld [vmem:[%s5 + $0x44] sm:$0xf]
  %v128 = vld [vmem:[%s5 + $0x48] sm:$0xf]
  %v129 = vld [vmem:[%s5 + $0x4c] sm:$0xf]
  %v130 = vld [vmem:[%s5 + $0x50] sm:$0xf]
  %v131 = vld [vmem:[%s5 + $0x54] sm:$0xf]
  %v132 = vld [vmem:[%s5 + $0x58] sm:$0xf]
  %v133 = vld [vmem:[%s5 + $0x5c] sm:$0xf]
  %v134 = vld [vmem:[%s5 + $0x60] sm:$0xf]
  %v135 = vld [vmem:[%s5 + $0x64] sm:$0xf]
  %v136 = vld [vmem:[%s5 + $0x68] sm:$0xf]
  %v137 = vld [vmem:[%s5 + $0x6c] sm:$0xf]
  %v138 = vld [vmem:[%s5 + $0x70] sm:$0xf]
  %v139 = vld [vmem:[%s5 + $0x74] sm:$0xf]
  %v140 = vld [vmem:[%s5 + $0x78] sm:$0xf]
  %v141 = vld [vmem:[%s5 + $0x7c] sm:$0xf]
  %v142 = vld [vmem:[%s5 + $0x80] sm:$0xf]
  %v143 = vld [vmem:[%s5 + $0x84] sm:$0xf]
  %v144 = vld [vmem:[%s5 + $0x88] sm:$0xf]
  %v145 = vld [vmem:[%s5 + $0x8c] sm:$0xf]
  %v146 = vld [vmem:[%s5 + $0x90] sm:$0xf]
  %v147 = vld [vmem:[%s5 + $0x94] sm:$0xf]
  %v148 = vld [vmem:[%s5 + $0x98] sm:$0xf]
  %v149 = vld [vmem:[%s5 + $0x9c] sm:$0xf]
  %v150 = vld [vmem:[%s5 + $0xa0] sm:$0xf]
  %v151 = vld [vmem:[%s5 + $0xa4] sm:$0xf]
  %v152 = vld [vmem:[%s5 + $0xa8] sm:$0xf]
  %v153 = vld [vmem:[%s5 + $0xac] sm:$0xf]
  %v154 = vld [vmem:[%s5 + $0xb0] sm:$0xf]
  %v155 = vld [vmem:[%s5 + $0xb4] sm:$0xf]
  %v156 = vld [vmem:[%s5 + $0xb8] sm:$0xf]
  %v157 = vld [vmem:[%s5 + $0xbc] sm:$0xf]
  %v158 = vld [vmem:[%s5 + $0xc0] sm:$0xf]
  %v159 = vld [vmem:[%s5 + $0xc4] sm:$0xf]
  %v160 = vld [vmem:[%s5 + $0xc8] sm:$0xf]
  %v161 = vld [vmem:[%s5 + $0xcc] sm:$0xf]
  %v162 = vld [vmem:[%s5 + $0xd0] sm:$0xf]
  %v163 = vld [vmem:[%s5 + $0xd4] sm:$0xf]
  %v164 = vld [vmem:[%s5 + $0xd8] sm:$0xf]
  %v165 = vld [vmem:[%s5 + $0xdc] sm:$0xf]
  %v166 = vld [vmem:[%s5 + $0xe0] sm:$0xf]
  %v167 = vld [vmem:[%s5 + $0xe4] sm:$0xf]
  %v168 = vld [vmem:[%s5 + $0xe8] sm:$0xf]
  %v169 = vld [vmem:[%s5 + $0xec] sm:$0xf]
  %v170 = vld [vmem:[%s5 + $0xf0] sm:$0xf]
  %v171 = vld [vmem:[%s5 + $0xf4] sm:$0xf]
  %v172 = vld [vmem:[%s5 + $0xf8] sm:$0xf]
  %v173 = vld [vmem:[%s5 + $0xfc] sm:$0xf]
  %v174 = vld [vmem:[%s5 + $0x100] sm:$0xf]
  %v175 = vunpack.c.l.bf16 %v174
  %v176 = vpack.c.bf16 %v109, %v108
  %v193 = vunpack.c.l.b16 %v110
  %v194 = vunpack.c.l.b16 %v111
  %v195 = vunpack.c.l.b16 %v112
  %v196 = vunpack.c.l.b16 %v113
  %v197 = vunpack.c.l.b16 %v114
  %v198 = vunpack.c.l.b16 %v115
  %v199 = vunpack.c.l.b16 %v116
  %v200 = vunpack.c.l.b16 %v117
  %v201 = vunpack.c.l.b16 %v118
  %v202 = vunpack.c.l.b16 %v119
  %v203 = vunpack.c.l.b16 %v120
  %v204 = vunpack.c.l.b16 %v121
  %v205 = vunpack.c.l.b16 %v122
  %v206 = vunpack.c.l.b16 %v123
  %v207 = vunpack.c.l.b16 %v124
  %v208 = vunpack.c.l.b16 %v125
  %v209 = vpack.c.b16 %v194, %v193
  %v210 = vpack.c.b16 %v196, %v195
  %v211 = vpack.c.b16 %v198, %v197
  %v212 = vpack.c.b16 %v200, %v199
  %v213 = vpack.c.b16 %v202, %v201
  %v214 = vpack.c.b16 %v204, %v203
  %v215 = vpack.c.b16 %v206, %v205
  %v216 = vpack.c.b16 %v208, %v207
  %225 = vmatprep.subr.bf16.mxu0 0
  %226 = vmatpush1.bf16.msra.mxu0 %v216
  %227 = vmatprep.subr.bf16.mxu0 0
  %228 = vmatpush1.bf16.msra.mxu0 %v215
  %229 = vmatprep.subr.bf16.mxu0 0
  %230 = vmatpush1.bf16.msra.mxu0 %v214
  %231 = vmatprep.subr.bf16.mxu0 0
  %232 = vmatpush1.bf16.msra.mxu0 %v213
  %233 = vmatprep.subr.bf16.mxu0 0
  %234 = vmatpush1.bf16.msra.mxu0 %v212
  %235 = vmatprep.subr.bf16.mxu0 0
  %236 = vmatpush1.bf16.msra.mxu0 %v211
  %237 = vmatprep.subr.bf16.mxu0 0
  %238 = vmatpush1.bf16.msra.mxu0 %v210
  %239 = vmatprep.subr.bf16.mxu0 0
  %240 = vmatpush1.bf16.msra.mxu0 %v209
  %241 = vmatprep.subr.bf16.mxu0 0
  %242 = vmatpush2.bf16.msra.mxu0 0
  %243 = vmatprep.subr.bf16.mxu0 0
  %244 = vmatpush2.bf16.msra.mxu0 0
  %245 = vmatprep.subr.bf16.mxu0 0
  %246 = vmatpush2.bf16.msra.mxu0 0
  %247 = vmatprep.subr.bf16.mxu0 0
  %248 = vmatpush2.bf16.msra.mxu0 0
  %249 = vmatprep.subr.bf16.mxu0 0
  %250 = vmatpush2.bf16.msra.mxu0 0
  %251 = vmatprep.subr.bf16.mxu0 0
  %252 = vmatpush2.bf16.msra.mxu0 0
  %253 = vmatprep.subr.bf16.mxu0 0
  %254 = vmatpush2.bf16.msra.mxu0 0
  %255 = vmatprep.subr.bf16.mxu0 0
  %256 = vmatpush2.bf16.msra.mxu0 0
  %257 = vmatprep.mubr.bf16.mxu0 0
  %258 = vmatmul.mubr.bf16.gmra.mxu0 %v176
  %v259 = vpop.f32.mrf.mxu0
  %v260 = vadd.f32 0.0, %v259
  %v261 = vpop.f32.mrf.mxu0
  %v262 = vpop.f32.mrf.mxu0
  %v263 = vadd.f32 0.0, %v262
  %v264 = vpop.f32.mrf.mxu0
  %265 = vdwg.mxu0
  %vm266 = vcmp.lt.s32.totalorder %v28, 40
  %vm267 = vcmp.ge.f32.partialorder %v260, 0.0
  %vm268 = vcmp.ge.f32.partialorder %v263, 0.0
  %v269 = vmul.f32 %v260, 0.1
  %v270 = vmul.f32 %v263, 0.1
  %v271 = vsel %vm267, %v260, %v269
  %v272 = vsel %vm268, %v263, %v270
  %v273 = vsel %vm266, %v271, %v260
  %v274 = vsel %vm266, %v272, %v263
  %vm275 = vcmp.eq.s32.totalorder %v28, 127
  %v276 = vsel %vm275, 1.0, %v273
  %v277 = vsel %vm275, 1.0, %v274
  %v278 = vpack.c.bf16 %v277, %v276
  %v295 = vunpack.c.l.b16 %v126
  %v296 = vunpack.c.l.b16 %v127
  %v297 = vunpack.c.l.b16 %v128
  %v298 = vunpack.c.l.b16 %v129
  %v299 = vunpack.c.l.b16 %v130
  %v300 = vunpack.c.l.b16 %v131
  %v301 = vunpack.c.l.b16 %v132
  %v302 = vunpack.c.l.b16 %v133
  %v303 = vunpack.c.l.b16 %v134
  %v304 = vunpack.c.l.b16 %v135
  %v305 = vunpack.c.l.b16 %v136
  %v306 = vunpack.c.l.b16 %v137
  %v307 = vunpack.c.l.b16 %v138
  %v308 = vunpack.c.l.b16 %v139
  %v309 = vunpack.c.l.b16 %v140
  %v310 = vunpack.c.l.b16 %v141
  %v311 = vpack.c.b16 %v296, %v295
  %v312 = vpack.c.b16 %v298, %v297
  %v313 = vpack.c.b16 %v300, %v299
  %v314 = vpack.c.b16 %v302, %v301
  %v315 = vpack.c.b16 %v304, %v303
  %v316 = vpack.c.b16 %v306, %v305
  %v317 = vpack.c.b16 %v308, %v307
  %v318 = vpack.c.b16 %v310, %v309
  %327 = vmatprep.subr.bf16.mxu0 0
  %328 = vmatpush1.bf16.msra.mxu0 %v318
  %329 = vmatprep.subr.bf16.mxu0 0
  %330 = vmatpush1.bf16.msra.mxu0 %v317
  %331 = vmatprep.subr.bf16.mxu0 0
  %332 = vmatpush1.bf16.msra.mxu0 %v316
  %333 = vmatprep.subr.bf16.mxu0 0
  %334 = vmatpush1.bf16.msra.mxu0 %v315
  %335 = vmatprep.subr.bf16.mxu0 0
  %336 = vmatpush1.bf16.msra.mxu0 %v314
  %337 = vmatprep.subr.bf16.mxu0 0
  %338 = vmatpush1.bf16.msra.mxu0 %v313
  %339 = vmatprep.subr.bf16.mxu0 0
  %340 = vmatpush1.bf16.msra.mxu0 %v312
  %341 = vmatprep.subr.bf16.mxu0 0
  %342 = vmatpush1.bf16.msra.mxu0 %v311
  %343 = vmatprep.subr.bf16.mxu0 0
  %344 = vmatpush2.bf16.msra.mxu0 0
  %345 = vmatprep.subr.bf16.mxu0 0
  %346 = vmatpush2.bf16.msra.mxu0 0
  %347 = vmatprep.subr.bf16.mxu0 0
  %348 = vmatpush2.bf16.msra.mxu0 0
  %349 = vmatprep.subr.bf16.mxu0 0
  %350 = vmatpush2.bf16.msra.mxu0 0
  %351 = vmatprep.subr.bf16.mxu0 0
  %352 = vmatpush2.bf16.msra.mxu0 0
  %353 = vmatprep.subr.bf16.mxu0 0
  %354 = vmatpush2.bf16.msra.mxu0 0
  %355 = vmatprep.subr.bf16.mxu0 0
  %356 = vmatpush2.bf16.msra.mxu0 0
  %357 = vmatprep.subr.bf16.mxu0 0
  %358 = vmatpush2.bf16.msra.mxu0 0
  %359 = vmatprep.mubr.bf16.mxu0 0
  %360 = vmatmul.mubr.bf16.gmra.mxu0 %v278
  %v361 = vpop.f32.mrf.mxu0
  %v362 = vadd.f32 0.0, %v361
  %v363 = vpop.f32.mrf.mxu0
  %v364 = vpop.f32.mrf.mxu0
  %v365 = vadd.f32 0.0, %v364
  %v366 = vpop.f32.mrf.mxu0
  %367 = vdwg.mxu0
  %v368 = vmax.f32 %v362, 0.0
  %v369 = vmax.f32 %v365, 0.0
  %v370 = vpack.c.bf16 %v369, %v368
  %v371 = vlaneseq
  %v372 = vshrl.u32 %v371, 7
  %v373 = vsub.s32 0, %v372
  %v374 = vrot.slane %v175, %v373
  %v391 = vunpack.c.l.b16 %v142
  %v392 = vunpack.c.l.b16 %v143
  %v393 = vunpack.c.l.b16 %v144
  %v394 = vunpack.c.l.b16 %v145
  %v395 = vunpack.c.l.b16 %v146
  %v396 = vunpack.c.l.b16 %v147
  %v397 = vunpack.c.l.b16 %v148
  %v398 = vunpack.c.l.b16 %v149
  %v399 = vunpack.c.l.b16 %v150
  %v400 = vunpack.c.l.b16 %v151
  %v401 = vunpack.c.l.b16 %v152
  %v402 = vunpack.c.l.b16 %v153
  %v403 = vunpack.c.l.b16 %v154
  %v404 = vunpack.c.l.b16 %v155
  %v405 = vunpack.c.l.b16 %v156
  %v406 = vunpack.c.l.b16 %v157
  %v407 = vpack.c.b16 %v392, %v391
  %v408 = vpack.c.b16 %v394, %v393
  %v409 = vpack.c.b16 %v396, %v395
  %v410 = vpack.c.b16 %v398, %v397
  %v411 = vpack.c.b16 %v400, %v399
  %v412 = vpack.c.b16 %v402, %v401
  %v413 = vpack.c.b16 %v404, %v403
  %v414 = vpack.c.b16 %v406, %v405
  %423 = vmatprep.subr.bf16.mxu0 0
  %424 = vmatpush1.bf16.msra.mxu0 %v414
  %425 = vmatprep.subr.bf16.mxu0 0
  %426 = vmatpush1.bf16.msra.mxu0 %v413
  %427 = vmatprep.subr.bf16.mxu0 0
  %428 = vmatpush1.bf16.msra.mxu0 %v412
  %429 = vmatprep.subr.bf16.mxu0 0
  %430 = vmatpush1.bf16.msra.mxu0 %v411
  %431 = vmatprep.subr.bf16.mxu0 0
  %432 = vmatpush1.bf16.msra.mxu0 %v410
  %433 = vmatprep.subr.bf16.mxu0 0
  %434 = vmatpush1.bf16.msra.mxu0 %v409
  %435 = vmatprep.subr.bf16.mxu0 0
  %436 = vmatpush1.bf16.msra.mxu0 %v408
  %437 = vmatprep.subr.bf16.mxu0 0
  %438 = vmatpush1.bf16.msra.mxu0 %v407
  %439 = vmatprep.subr.bf16.mxu0 0
  %440 = vmatpush2.bf16.msra.mxu0 0
  %441 = vmatprep.subr.bf16.mxu0 0
  %442 = vmatpush2.bf16.msra.mxu0 0
  %443 = vmatprep.subr.bf16.mxu0 0
  %444 = vmatpush2.bf16.msra.mxu0 0
  %445 = vmatprep.subr.bf16.mxu0 0
  %446 = vmatpush2.bf16.msra.mxu0 0
  %447 = vmatprep.subr.bf16.mxu0 0
  %448 = vmatpush2.bf16.msra.mxu0 0
  %449 = vmatprep.subr.bf16.mxu0 0
  %450 = vmatpush2.bf16.msra.mxu0 0
  %451 = vmatprep.subr.bf16.mxu0 0
  %452 = vmatpush2.bf16.msra.mxu0 0
  %453 = vmatprep.subr.bf16.mxu0 0
  %454 = vmatpush2.bf16.msra.mxu0 0
  %455 = vmatprep.mubr.bf16.mxu0 0
  %456 = vmatmul.mubr.bf16.gmra.mxu0 %v370
  %v457 = vpop.f32.mrf.mxu0
  %v458 = vadd.f32 %v374, %v457
  %v459 = vpop.f32.mrf.mxu0
  %v460 = vpop.f32.mrf.mxu0
  %v461 = vadd.f32 %v374, %v460
  %v462 = vpop.f32.mrf.mxu0
  %463 = vdwg.mxu0
  %v464 = vmax.f32 %v458, 0.0
  %v465 = vmax.f32 %v461, 0.0
  %v466 = vpack.c.bf16 %v465, %v464
  %v467 = vlaneseq
  %v468 = vshrl.u32 %v467, 7
  %v469 = vsub.s32 1, %v468
  %v470 = vrot.slane %v175, %v469
  %v487 = vunpack.c.l.b16 %v158
  %v488 = vunpack.c.l.b16 %v159
  %v489 = vunpack.c.l.b16 %v160
  %v490 = vunpack.c.l.b16 %v161
  %v491 = vunpack.c.l.b16 %v162
  %v492 = vunpack.c.l.b16 %v163
  %v493 = vunpack.c.l.b16 %v164
  %v494 = vunpack.c.l.b16 %v165
  %v495 = vunpack.c.l.b16 %v166
  %v496 = vunpack.c.l.b16 %v167
  %v497 = vunpack.c.l.b16 %v168
  %v498 = vunpack.c.l.b16 %v169
  %v499 = vunpack.c.l.b16 %v170
  %v500 = vunpack.c.l.b16 %v171
  %v501 = vunpack.c.l.b16 %v172
  %v502 = vunpack.c.l.b16 %v173
  %v503 = vpack.c.b16 %v488, %v487
  %v504 = vpack.c.b16 %v490, %v489
  %v505 = vpack.c.b16 %v492, %v491
  %v506 = vpack.c.b16 %v494, %v493
  %v507 = vpack.c.b16 %v496, %v495
  %v508 = vpack.c.b16 %v498, %v497
  %v509 = vpack.c.b16 %v500, %v499
  %v510 = vpack.c.b16 %v502, %v501
  %519 = vmatprep.subr.bf16.mxu0 0
  %520 = vmatpush1.bf16.msra.mxu0 %v510
  %521 = vmatprep.subr.bf16.mxu0 0
  %522 = vmatpush1.bf16.msra.mxu0 %v509
  %523 = vmatprep.subr.bf16.mxu0 0
  %524 = vmatpush1.bf16.msra.mxu0 %v508
  %525 = vmatprep.subr.bf16.mxu0 0
  %526 = vmatpush1.bf16.msra.mxu0 %v507
  %527 = vmatprep.subr.bf16.mxu0 0
  %528 = vmatpush1.bf16.msra.mxu0 %v506
  %529 = vmatprep.subr.bf16.mxu0 0
  %530 = vmatpush1.bf16.msra.mxu0 %v505
  %531 = vmatprep.subr.bf16.mxu0 0
  %532 = vmatpush1.bf16.msra.mxu0 %v504
  %533 = vmatprep.subr.bf16.mxu0 0
  %534 = vmatpush1.bf16.msra.mxu0 %v503
  %535 = vmatprep.subr.bf16.mxu0 0
  %536 = vmatpush2.bf16.msra.mxu0 0
  %537 = vmatprep.subr.bf16.mxu0 0
  %538 = vmatpush2.bf16.msra.mxu0 0
  %539 = vmatprep.subr.bf16.mxu0 0
  %540 = vmatpush2.bf16.msra.mxu0 0
  %541 = vmatprep.subr.bf16.mxu0 0
  %542 = vmatpush2.bf16.msra.mxu0 0
  %543 = vmatprep.subr.bf16.mxu0 0
  %544 = vmatpush2.bf16.msra.mxu0 0
  %545 = vmatprep.subr.bf16.mxu0 0
  %546 = vmatpush2.bf16.msra.mxu0 0
  %547 = vmatprep.subr.bf16.mxu0 0
  %548 = vmatpush2.bf16.msra.mxu0 0
  %549 = vmatprep.subr.bf16.mxu0 0
  %550 = vmatpush2.bf16.msra.mxu0 0
  %551 = vmatprep.mubr.bf16.mxu0 0
  %552 = vmatmul.mubr.bf16.gmra.mxu0 %v466
  %v553 = vpop.f32.mrf.mxu0
  %v554 = vadd.f32 %v470, %v553
  %v555 = vpop.f32.mrf.mxu0
  %v556 = vpop.f32.mrf.mxu0
  %v557 = vadd.f32 %v470, %v556
  %v558 = vpop.f32.mrf.mxu0
  %559 = vdwg.mxu0
  %v560 = vlaneseq
  %v561 = vshrl.u32 %v560, 7
  %v562 = vadd.s32 %v561, 8
  %vm563 = vcmp.lt.s32.totalorder %v561, 8
  %vm564 = vcmp.lt.s32.totalorder %v562, 8
  %567 = vrot.lane.b32.xlu0 %v554, 125
  %v568 = vpop.permute.xlu0 %567
  %569 = vrot.lane.b32.xlu0 %v557, 125
  %v570 = vpop.permute.xlu0 %569
  %v573 = vsel %vm563, %v554, %v568
  %v574 = vsel %vm564, %v557, %v570
  %vm575 = vcmask 23552
  %v576 = vsel %vm575, %v573, -inf
  %577 = vmax.xlane.f32.xlu0 %v576
  %v578 = vpop.xlane.xlu0 %577
  %v579 = vsel %vm575, %v574, -inf
  %580 = vmax.xlane.f32.xlu0 %v579
  %v581 = vpop.xlane.xlu0 %580
  %v582 = vsub.f32 %v573, %v578
  %v583 = vsub.f32 %v574, %v581
  %v584 = vmul.f32 %v582, 1.442695
  %v585 = vpow.pop %v584
  %v586 = vmul.f32 %v583, 1.442695
  %v587 = vpow.pop %v586
  %v588 = vsel %vm575, %v585, 0.0
  %589 = vadd.xlane.f32.xlu0 %v588
  %v590 = vpop.xlane.xlu0 %589
  %v591 = vsel %vm575, %v587, 0.0
  %592 = vadd.xlane.f32.xlu0 %v591
  %v593 = vpop.xlane.xlu0 %592
  %v594 = vrcp.pop %v590
  %v595 = vrcp.pop %v593
  %v596 = vmul.f32 %v585, %v594
  %v597 = vmul.f32 %v587, %v595
  %v598 = vadd.f32 %v596, %v597
  %v599 = vmul.f32 %v598, 0.5
  %vm600 = vcmp.eq.s32.totalorder %v24, 5
  %vm601 = vcmp.eq.s32.totalorder %v24, 7
  %vm602 = vmor %vm600, %vm601
  %vm603 = vcmp.eq.s32.totalorder %v24, 11
  %v604 = vsel %vm603, 1, 0
  %605 = vrot.lane.b32.xlu0 %v604, 127
  %v606 = vpop.permute.xlu0 %605
  %vm607 = vcmp.ne.s32.totalorder %v606, 0
  %vm608 = vmand %vm602, %vm607
  %vm609 = vcmp.eq.s32.totalorder %v24, 4
  %v610 = vsel %vm609, 1, 0
  %611 = vrot.lane.b32.xlu0 %v610, 126
  %v612 = vpop.permute.xlu0 %611
  %vm613 = vcmp.ne.s32.totalorder %v612, 0
  %vm614 = vmand %vm608, %vm613
  %v615 = vsel %vm614, 0.0, 1.0
  %vm616 = vcmp.eq.s32.totalorder %v28, 0
  %v617 = vsel %vm616, 0.9, 0.0
  %vm618 = vcmp.eq.s32.totalorder %v28, 1
  %vm619 = vcmp.eq.s32.totalorder %v28, 7
  %vm620 = vmor %vm618, %vm619
  %v621 = vsel %vm620, 0.1, 0.0
  %v622 = vadd.f32 %v617, %v621
  %vm623 = vcmp.eq.s32.totalorder %v28, 8
  %v624 = vsel %vm623, 0.9, 0.0
  %v625 = vadd.f32 %v622, %v624
  %vm626 = vcmp.eq.s32.totalorder %v28, 4
  %vm627 = vmor %vm618, %vm626
  %vm628 = vmor %vm627, %vm619
  %v629 = vsel %vm628, 1.0, 0.0
  %631 = vrot.lane.b32.xlu0 %v599, 3
  %v632 = vpop.permute.xlu0 %631
  %v634 = vsel %vm575, 0.0, %v632
  %vm635 = vcmask 48128
  %v636 = vsel %vm635, %v634, 0.0
  %v637 = vadd.f32 %v625, %v636
  %639 = vset.pattern.permute.xlu0 1
  %640 = vperm.xlu0 %639, %v615
  %v641 = vpop.permute.xlu0 %640
  %v643 = vmul.f32 %v641, %v637
  %v644 = vsub.f32 1.0, %v615
  %646 = vset.pattern.permute.xlu0 1
  %647 = vperm.xlu0 %646, %v644
  %v648 = vpop.permute.xlu0 %647
  %v650 = vmul.f32 %v648, %v629
  %v651 = vadd.f32 %v643, %v650
  %vm652 = vcmask 130048
  %653 = vst.msk [vmem:[%s6] sm:$0xff] %vm652, %v651
  // Predicated region
  $region26: #{net_forward_pallas.1} parent=0 // pred_check
    _
  $region27: #{net_forward_pallas.1} parent=0 // pred_check_branch
    %655 = sbr.rel (0) target = $region29
  $region28: #{net_forward_pallas.1} parent=0 // pred_region
    _
  $region29: #{net_forward_pallas.1} parent=0 // pred_fallthru
    _
  // Predicated region
  $region30: #{net_forward_pallas.1} parent=0 // pred_check
    _
  $region31: #{net_forward_pallas.1} parent=0 // pred_check_branch
    %657 = sbr.rel (0) target = $region33
  $region32: #{net_forward_pallas.1} parent=0 // pred_region
    _
  $region33: #{net_forward_pallas.1} parent=0 // pred_fallthru
    _

</llo_original>
